<compile_context>
chip_gen: v7x
topology: tpu7x:2x2x1
jax: 0.10.0
libtpu: 0.0.40
codegen_flags: <defaults>
</compile_context>

<pallas_src>
import functools

import jax
import jax.numpy as jnp
from jax.experimental import pallas as pl
from jax.experimental.pallas import tpu as pltpu


def _kd_loss_kernel(t_ref, s_ref, o_ref, *, inv_temperature, n_rows, tile_n,
                    need_mask):
    """One row-block: write this block's summed KL(teacher || student) terms.

    o_ref is a lane-dense (1, 8, 128) block holding the block partial sum
    broadcast across all lanes (host reads [:, 0, 0]).
    """
    inv_t = jnp.float32(inv_temperature)
    t = t_ref[...].astype(jnp.float32) * inv_t   # teacher logits / T
    s = s_ref[...].astype(jnp.float32) * inv_t   # student logits / T

    if need_mask:
        # Ragged last block: zero logits in rows beyond N (zero rows -> KL == 0).
        row = (jax.lax.broadcasted_iota(jnp.int32, (tile_n, 1), 0)
               + pl.program_id(0) * tile_n)
        valid = row < n_rows
        t = jnp.where(valid, t, 0.0)
        s = jnp.where(valid, s, 0.0)

    # Teacher softmax stats (numerically stable).
    t_max = jnp.max(t, axis=-1, keepdims=True)
    t_exp = jnp.exp(t - t_max)
    t_sum = jnp.sum(t_exp, axis=-1, keepdims=True)

    # Student log-sum-exp.
    s_max = jnp.max(s, axis=-1, keepdims=True)
    s_lse = jnp.log(jnp.sum(jnp.exp(s - s_max), axis=-1, keepdims=True))

    # Per-row constant: D_r = lse(s/T) - lse(t/T).
    d_row = (s_max + s_lse) - (t_max + jnp.log(t_sum))

    # KL_r = (1/t_sum) * sum_c t_exp_c * ((t_c - s_c) + D_r)
    #      = sum_c p_c * (log p_c - log q_c)
    # No full-size p_t / log_p / log_q arrays are materialized; the softmax
    # normalization is a single per-row approximate EUP reciprocal.
    row_num = jnp.sum(t_exp * ((t - s) + d_row), axis=-1, keepdims=True)
    kl_row = row_num * pl.reciprocal(t_sum, approx=True)       # (tile_n, 1)

    block_sum = jnp.sum(kl_row, axis=0, keepdims=True)          # (1, 1)
    o_ref[...] = jnp.broadcast_to(block_sum, o_ref.shape)       # lane-dense store


def _choose_tile_n(n_rows, n_cols, in_itemsize,
                   vmem_budget_bytes=24 << 20, max_tile=4096):
    """Largest row block whose working set fits a generation-safe VMEM budget.

    Working set per block ~= 2 inputs x 2 pipeline buffers x tile_n*C*itemsize
    plus a handful of full-size f32 temporaries inside the kernel.  24 MiB is
    safe on v5e/v6e (128 MiB physical) and on v7x (64 MiB physical).
    """
    bytes_per_row = n_cols * (4 * in_itemsize + 24)  # pipeline bufs + ~6 f32 temps
    rows_budget = max(8, vmem_budget_bytes // bytes_per_row)
    tile = int(min(max_tile, rows_budget, n_rows))
    if tile >= n_rows:
        return n_rows                 # single full-extent block
    # Multiple blocks: keep sublane tiling happy for f32/bf16/int8 inputs.
    mult = 32 if tile >= 32 else 8
    return max(8, (tile // mult) * mult)


def custom_kl_div_loss(teacher_outputs, outputs, temperature=5, tile_n=None):
    """Pallas implementation of CustomKLDivLoss.forward.

    teacher_outputs, outputs: (N, C) logits (f32 or bf16; bf16 halves HBM traffic).
    Returns the scalar f32 loss
        KLDivLoss(log_softmax(outputs/T), softmax(teacher/T)) * T^2
    with nn.KLDivLoss()'s default reduction='mean' (mean over all N*C elements).
    """
    assert teacher_outputs.shape == outputs.shape
    assert teacher_outputs.ndim == 2
    n_rows, n_cols = teacher_outputs.shape
    in_itemsize = max(jnp.dtype(teacher_outputs.dtype).itemsize,
                      jnp.dtype(outputs.dtype).itemsize)

    if tile_n is None:
        tile_n = _choose_tile_n(n_rows, n_cols, in_itemsize)
    tile_n = min(int(tile_n), n_rows)
    num_blocks = pl.cdiv(n_rows, tile_n)
    need_mask = (n_rows % tile_n) != 0

    # NOTE: if C < 128 the class axis only part-fills the 128-wide vector lanes;
    # small-C callers would get better DMA/VPU utilization by packing several
    # rows per lane-row outside the kernel (not done here).

    kernel = functools.partial(
        _kd_loss_kernel,
        inv_temperature=1.0 / float(temperature),
        n_rows=n_rows, tile_n=tile_n, need_mask=need_mask)

    # Scoped-VMEM limit sized to the block working set (+ headroom); raised
    # explicitly because the defaults are only 16 MiB (v5e) / 32 MiB (v6e/v7x).
    est_bytes = tile_n * n_cols * (4 * in_itemsize + 24) + (1 << 20)
    vmem_limit_bytes = int(min(48 << 20, max(24 << 20, est_bytes + (4 << 20))))

    partials = pl.pallas_call(
        kernel,
        out_shape=jax.ShapeDtypeStruct((num_blocks, 8, 128), jnp.float32),
        grid_spec=pltpu.PrefetchScalarGridSpec(
            num_scalar_prefetch=0,
            grid=(num_blocks,),
            in_specs=[
                pl.BlockSpec((tile_n, n_cols), lambda i: (i, 0)),
                pl.BlockSpec((tile_n, n_cols), lambda i: (i, 0)),
            ],
            out_specs=pl.BlockSpec((1, 8, 128), lambda i: (i, 0, 0)),
        ),
        compiler_params=pltpu.CompilerParams(
            # Every grid step writes its own independent output tile, so the
            # row axis is truly parallel -> shardable across TensorCores (v7x).
            dimension_semantics=("parallel",),
            vmem_limit_bytes=vmem_limit_bytes,
        ),
    )(teacher_outputs, outputs)

    t_f = jnp.float32(temperature)
    kl_sum = jnp.sum(partials[:, 0, 0])
    # nn.KLDivLoss() default reduction='mean' divides by the number of elements.
    return (kl_sum / jnp.float32(n_rows * n_cols)) * (t_f * t_f)


def _reference(teacher_outputs, outputs, temperature=5):
    """Pure-JAX reference mirroring the PyTorch semantics (sanity check)."""
    T = temperature
    log_q = jax.nn.log_softmax(outputs.astype(jnp.float32) / T, axis=1)
    log_p = jax.nn.log_softmax(teacher_outputs.astype(jnp.float32) / T, axis=1)
    p = jnp.exp(log_p)
    kl = p * (log_p - log_q)
    return jnp.mean(kl) * (T * T)


if __name__ == "__main__":
    key = jax.random.PRNGKey(0)
    k1, k2 = jax.random.split(key)

    # Small (batch, num_classes) logits consistent with a classification head.
    N, C = 16, 32
    teacher_logits = jax.random.normal(k1, (N, C), dtype=jnp.float32) * 4.0
    student_logits = jax.random.normal(k2, (N, C), dtype=jnp.float32) * 4.0

    # 1) auto-tiled path (single full-extent block at this tiny size).
    loss = custom_kl_div_loss(teacher_logits, student_logits, temperature=5)
    loss = jax.block_until_ready(loss)
    ref = jax.block_until_ready(_reference(teacher_logits, student_logits, 5))
    # approx=True EUP reciprocal in-kernel -> allow a small relative tolerance.
    assert jnp.allclose(loss, ref, rtol=5e-3, atol=1e-6), (loss, ref)

    # 2) multi-block path with a ragged tail (exercises masking + parallel grid).
    N2 = 20
    t2 = jax.random.normal(k1, (N2, C), dtype=jnp.float32) * 4.0
    s2 = jax.random.normal(k2, (N2, C), dtype=jnp.float32) * 4.0
    loss2 = jax.block_until_ready(custom_kl_div_loss(t2, s2, temperature=5, tile_n=8))
    ref2 = jax.block_until_ready(_reference(t2, s2, 5))
    assert jnp.allclose(loss2, ref2, rtol=5e-3, atol=1e-6), (loss2, ref2)

    print("KERNEL_OK")
</pallas_src>

<mosaic_0001>
module attributes {stable_mosaic.version = 11 : i64} {
  func.func @_kd_loss_kernel(%arg0: i32, %arg1: memref<16x32xf32, #tpu.memory_space<vmem>>, %arg2: memref<16x32xf32, #tpu.memory_space<vmem>>, %arg3: memref<1x8x128xf32, #tpu.memory_space<vmem>>) attributes {dimension_semantics = [#tpu.dimension_semantics<parallel>], iteration_bounds = array<i64: 1>, scalar_prefetch = 0 : i64, scratch_operands = 0 : i64, tpu.core_type = #tpu.core_type<tc>, window_params = [{transform_indices = @transform_0, window_bounds = array<i64: 16, 32>}, {transform_indices = @transform_1, window_bounds = array<i64: 16, 32>}, {transform_indices = @transform_2, window_bounds = array<i64: 1, 8, 128>}]} {
    %c0 = arith.constant 0 : index
    %c0_0 = arith.constant 0 : index
    %0 = vector.load %arg1[%c0, %c0_0] : memref<16x32xf32, #tpu.memory_space<vmem>>, vector<16x32xf32>
    %cst = arith.constant 2.000000e-01 : f32
    %1 = vector.broadcast %cst : f32 to vector<16x32xf32>
    %2 = arith.mulf %0, %1 : vector<16x32xf32>
    %c0_1 = arith.constant 0 : index
    %c0_2 = arith.constant 0 : index
    %3 = vector.load %arg2[%c0_1, %c0_2] : memref<16x32xf32, #tpu.memory_space<vmem>>, vector<16x32xf32>
    %cst_3 = arith.constant 2.000000e-01 : f32
    %4 = vector.broadcast %cst_3 : f32 to vector<16x32xf32>
    %5 = arith.mulf %3, %4 : vector<16x32xf32>
    %cst_4 = arith.constant dense<0xFF800000> : vector<16xf32>
    %6 = vector.multi_reduction <maximumf>, %2, %cst_4 [1] : vector<16x32xf32> to vector<16xf32>
    %7 = vector.shape_cast %6 : vector<16xf32> to vector<16x1xf32>
    %8 = vector.broadcast %7 : vector<16x1xf32> to vector<16x32xf32>
    %9 = arith.subf %2, %8 : vector<16x32xf32>
    %10 = math.exp %9 : vector<16x32xf32>
    %cst_5 = arith.constant dense<0.000000e+00> : vector<16xf32>
    %11 = vector.multi_reduction <add>, %10, %cst_5 [1] : vector<16x32xf32> to vector<16xf32>
    %12 = vector.shape_cast %11 : vector<16xf32> to vector<16x1xf32>
    %cst_6 = arith.constant dense<0xFF800000> : vector<16xf32>
    %13 = vector.multi_reduction <maximumf>, %5, %cst_6 [1] : vector<16x32xf32> to vector<16xf32>
    %14 = vector.shape_cast %13 : vector<16xf32> to vector<16x1xf32>
    %15 = vector.broadcast %14 : vector<16x1xf32> to vector<16x32xf32>
    %16 = arith.subf %5, %15 : vector<16x32xf32>
    %17 = math.exp %16 : vector<16x32xf32>
    %cst_7 = arith.constant dense<0.000000e+00> : vector<16xf32>
    %18 = vector.multi_reduction <add>, %17, %cst_7 [1] : vector<16x32xf32> to vector<16xf32>
    %19 = vector.shape_cast %18 : vector<16xf32> to vector<16x1xf32>
    %20 = math.log %19 : vector<16x1xf32>
    %21 = arith.addf %14, %20 : vector<16x1xf32>
    %22 = math.log %12 : vector<16x1xf32>
    %23 = arith.addf %7, %22 : vector<16x1xf32>
    %24 = arith.subf %21, %23 : vector<16x1xf32>
    %25 = arith.subf %2, %5 : vector<16x32xf32>
    %26 = vector.broadcast %24 : vector<16x1xf32> to vector<16x32xf32>
    %27 = arith.addf %25, %26 : vector<16x32xf32>
    %28 = arith.mulf %10, %27 : vector<16x32xf32>
    %cst_8 = arith.constant dense<0.000000e+00> : vector<16xf32>
    %29 = vector.multi_reduction <add>, %28, %cst_8 [1] : vector<16x32xf32> to vector<16xf32>
    %30 = vector.shape_cast %29 : vector<16xf32> to vector<16x1xf32>
    %31 = tpu.reciprocal %12 {approx = true} : vector<16x1xf32> -> vector<16x1xf32>
    %32 = arith.mulf %30, %31 : vector<16x1xf32>
    %cst_9 = arith.constant dense<0.000000e+00> : vector<1xf32>
    %33 = vector.multi_reduction <add>, %32, %cst_9 [0] : vector<16x1xf32> to vector<1xf32>
    %34 = vector.shape_cast %33 : vector<1xf32> to vector<1x1xf32>
    %35 = vector.shape_cast %34 : vector<1x1xf32> to vector<1x1x1xf32>
    %36 = vector.broadcast %35 : vector<1x1x1xf32> to vector<1x8x128xf32>
    %c0_10 = arith.constant 0 : index
    %c0_11 = arith.constant 0 : index
    %c0_12 = arith.constant 0 : index
    %37 = vector.load %arg3[%c0_10, %c0_11, %c0_12] : memref<1x8x128xf32, #tpu.memory_space<vmem>>, vector<1x8x128xf32>
    tpu.vector_store %arg3[%c0_10, %c0_11, %c0_12], %36 {strides = array<i32>} : memref<1x8x128xf32, #tpu.memory_space<vmem>>, vector<1x8x128xf32>,
    return
  }
  func.func @transform_0(%arg0: i32) -> (i32, i32) {
    %c0_i32 = arith.constant 0 : i32
    %c0_i32_0 = arith.constant 0 : i32
    return %arg0, %c0_i32 : i32, i32
  }
  func.func @transform_1(%arg0: i32) -> (i32, i32) {
    %c0_i32 = arith.constant 0 : i32
    %c0_i32_0 = arith.constant 0 : i32
    return %arg0, %c0_i32 : i32, i32
  }
  func.func @transform_2(%arg0: i32) -> (i32, i32, i32) {
    %c0_i32 = arith.constant 0 : i32
    %c0_i32_0 = arith.constant 0 : i32
    %c0_i32_1 = arith.constant 0 : i32
    return %arg0, %c0_i32, %c0_i32_0 : i32, i32, i32
  }
}

</mosaic_0001>

<llo_original>
// kernel: tpu_custom_call.1
$region0: #{tpu_custom_call.1}
  #allocation0 [shape = 'u32[]', space=smem, size = 0x4, offset = 0x4, fixed_abs, tag = 'smem constant byte address 0x4 - core index']
  #allocation1 [shape = 'u32[144,128]{1,0:T(1,128)}', space=vmem, size = 0x12000, scoped, tag = 'internal scratch']
  %s0 = inlined_call_operand.hbm [shape: f32[16,32], index: 0, kind: input, shape index: {}]
  %s1 = inlined_call_operand.hbm [shape: f32[16,32], index: 1, kind: input, shape index: {}]
  %s2 = inlined_call_operand.hbm [shape: f32[1,8,128], index: 2, kind: output, shape index: {}]
  %s3 = sld [smem:[#allocation0]]
  $region26: #{tpu_custom_call.1} parent=0
    _
  %s5 = ssub.s32 1, %s3
  %s6 = scalar_select 0, %s5, %s3
  $region1: #{tpu_custom_call.1} parent=0
    #allocation2 [shape = 'u8[8192]{0}', space=vmem, size = 0x2000, scoped, tag = 'input window, operand 0, single buffered']
    #allocation3 [shape = 's32[1]{0}', space=sflag, size = 0x4, scoped, tag = 'scoped memory for tpu_custom_call.1']
    #allocation4 [shape = 's32[1]{0}', space=sflag, size = 0x4, scoped, tag = 'scoped memory for tpu_custom_call.1']
    #allocation5 [shape = 'u8[8192]{0}', space=vmem, size = 0x2000, scoped, tag = 'input window, operand 1, single buffered']
    #allocation6 [shape = 's32[1]{0}', space=sflag, size = 0x4, scoped, tag = 'scoped memory for tpu_custom_call.1']
    #allocation7 [shape = 'u8[4096]{0}', space=vmem, size = 0x1000, scoped, tag = 'output window, operand 0, single buffered']
    %7 = vsyncpa [#allocation3], 0
    %8 = vsyncpa [#allocation6], 0
    %9 = vsyncpa [#allocation4], 0
    // Predicated region
    $region2: #{tpu_custom_call.1} parent=1 // pred_check
      _
    $region3: #{tpu_custom_call.1} parent=1 // pred_check_branch
      %11 = sbr.rel (0) target = $region5
    $region4: #{tpu_custom_call.1} parent=1 // pred_region
      %s13 = ssub.s32 256, 256
      %14 = vsyncadd [#allocation3], %s13
      %s15 = sshll.u32 [#allocation2], 4
      %s16 = int_to_ptr.vmem [resolvable:$true] %s15
      %21 = dma.hbm_to_vmem [thread:$0]  %s0, 256, %s16, [#allocation3], 128, 128, 8
    $region5: #{tpu_custom_call.1} parent=1 // pred_fallthru
      _
    // Predicated region
    $region6: #{tpu_custom_call.1} parent=1 // pred_check
      _
    $region7: #{tpu_custom_call.1} parent=1 // pred_check_branch
      %23 = sbr.rel (0) target = $region9
    $region8: #{tpu_custom_call.1} parent=1 // pred_region
      %s25 = ssub.s32 256, 256
      %26 = vsyncadd [#allocation6], %s25
      %s27 = sshll.u32 [#allocation5], 4
      %s28 = int_to_ptr.vmem [resolvable:$true] %s27
      %33 = dma.hbm_to_vmem [thread:$0]  %s1, 256, %s28, [#allocation6], 128, 128, 8
    $region9: #{tpu_custom_call.1} parent=1 // pred_fallthru
      _
    // Predicated region
    $region10: #{tpu_custom_call.1} parent=1 // pred_check
      _
    $region11: #{tpu_custom_call.1} parent=1 // pred_check_branch
      %35 = sbr.rel (0) target = $region13
    $region12: #{tpu_custom_call.1} parent=1 // pred_region
      %36 = dma.done [#allocation3], 256
    $region13: #{tpu_custom_call.1} parent=1 // pred_fallthru
      _
    // Predicated region
    $region14: #{tpu_custom_call.1} parent=1 // pred_check
      _
    $region15: #{tpu_custom_call.1} parent=1 // pred_check_branch
      %38 = sbr.rel (0) target = $region17
    $region16: #{tpu_custom_call.1} parent=1 // pred_region
      %39 = dma.done [#allocation6], 256
    $region17: #{tpu_custom_call.1} parent=1 // pred_fallthru
      _
    %v40 = vld [vmem:[#allocation2] sm:$0xff]
    %v41 = vld [vmem:[#allocation2 + $0x8] sm:$0xff]
    %v42 = vmul.f32 %v40, 0.2
    %v43 = vmul.f32 %v41, 0.2
    %v44 = vld [vmem:[#allocation5] sm:$0xff]
    %v45 = vld [vmem:[#allocation5 + $0x8] sm:$0xff]
    %v46 = vmul.f32 %v44, 0.2
    %v47 = vmul.f32 %v45, 0.2
    %vm48 = vcmask 261120
    %v49 = vsel %vm48, %v42, -inf
    %50 = vmax.xlane.f32.xlu0 %v49
    %v51 = vpop.xlane.xlu0 %50
    %v52 = vsel %vm48, %v43, -inf
    %53 = vmax.xlane.f32.xlu0 %v52
    %v54 = vpop.xlane.xlu0 %53
    %v55 = vsub.f32 %v42, %v51
    %v56 = vsub.f32 %v43, %v54
    %v57 = vmul.f32 %v55, 1.442695
    %v58 = vpow.pop %v57
    %v59 = vmul.f32 %v56, 1.442695
    %v60 = vpow.pop %v59
    %v61 = vsel %vm48, %v58, 0.0
    %62 = vadd.xlane.f32.xlu0 %v61
    %v63 = vpop.xlane.xlu0 %62
    %v64 = vsel %vm48, %v60, 0.0
    %65 = vadd.xlane.f32.xlu0 %v64
    %v66 = vpop.xlane.xlu0 %65
    %v67 = vsel %vm48, %v46, -inf
    %68 = vmax.xlane.f32.xlu0 %v67
    %v69 = vpop.xlane.xlu0 %68
    %v70 = vsel %vm48, %v47, -inf
    %71 = vmax.xlane.f32.xlu0 %v70
    %v72 = vpop.xlane.xlu0 %71
    %v73 = vsub.f32 %v46, %v69
    %v74 = vsub.f32 %v47, %v72
    %v75 = vmul.f32 %v73, 1.442695
    %v76 = vpow.pop %v75
    %v77 = vmul.f32 %v74, 1.442695
    %v78 = vpow.pop %v77
    %v79 = vsel %vm48, %v76, 0.0
    %80 = vadd.xlane.f32.xlu0 %v79
    %v81 = vpop.xlane.xlu0 %80
    %v82 = vsel %vm48, %v78, 0.0
    %83 = vadd.xlane.f32.xlu0 %v82
    %v84 = vpop.xlane.xlu0 %83
    %v85 = vlog2.pop %v81
    %v86 = vmul.f32 %v85, 0.6931472
    %v87 = vlog2.pop %v84
    %v88 = vmul.f32 %v87, 0.6931472
    %v89 = vadd.f32 %v69, %v86
    %v90 = vadd.f32 %v72, %v88
    %v91 = vlog2.pop %v63
    %v92 = vmul.f32 %v91, 0.6931472
    %v93 = vlog2.pop %v66
    %v94 = vmul.f32 %v93, 0.6931472
    %v95 = vadd.f32 %v51, %v92
    %v96 = vadd.f32 %v54, %v94
    %v97 = vsub.f32 %v89, %v95
    %v98 = vsub.f32 %v90, %v96
    %v99 = vsub.f32 %v42, %v46
    %v100 = vsub.f32 %v43, %v47
    %v101 = vadd.f32 %v99, %v97
    %v102 = vadd.f32 %v100, %v98
    %v103 = vmul.f32 %v58, %v101
    %v104 = vmul.f32 %v60, %v102
    %v105 = vsel %vm48, %v103, 0.0
    %106 = vadd.xlane.f32.xlu0 %v105
    %v107 = vpop.xlane.xlu0 %106
    %v108 = vsel %vm48, %v104, 0.0
    %109 = vadd.xlane.f32.xlu0 %v108
    %v110 = vpop.xlane.xlu0 %109
    %v111 = vrcp.pop %v63
    %v112 = vrcp.pop %v66
    %v113 = vmul.f32 %v107, %v111
    %v114 = vmul.f32 %v110, %v112
    %v115 = vadd.f32 %v113, %v114
    %v116 = vrot.slane %v115, 4
    %v117 = vadd.f32 %v115, %v116
    %v118 = vrot.slane %v117, 2
    %v119 = vadd.f32 %v117, %v118
    %v120 = vrot.slane %v119, 1
    %v121 = vadd.f32 %v119, %v120
    %122 = vst [vmem:[#allocation7] sm:$0xff] %v121
    // Predicated region
    $region18: #{tpu_custom_call.1} parent=1 // pred_check
      _
    $region19: #{tpu_custom_call.1} parent=1 // pred_check_branch
      %124 = sbr.rel (0) target = $region21
    $region20: #{tpu_custom_call.1} parent=1 // pred_region
      %s126 = ssub.s32 128, 128
      %127 = vsyncadd [#allocation4], %s126
      %s129 = sshll.u32 [#allocation7], 4
      %s130 = int_to_ptr.vmem [resolvable:$true] %s129
      %132 = dma.vmem_to_hbm [thread:$0]  %s130, 128, %s2, [#allocation4]
    $region21: #{tpu_custom_call.1} parent=1 // pred_fallthru
      _
    // Predicated region
    $region22: #{tpu_custom_call.1} parent=1 // pred_check
      _
    $region23: #{tpu_custom_call.1} parent=1 // pred_check_branch
      %134 = sbr.rel (0) target = $region25
    $region24: #{tpu_custom_call.1} parent=1 // pred_region
      %135 = dma.done [#allocation4], 128
    $region25: #{tpu_custom_call.1} parent=1 // pred_fallthru
      _
    %136 = vsyncpa [#allocation3], 1
    %137 = vsyncpa [#allocation6], 1
    %138 = vsyncpa [#allocation4], 1

</llo_original>
